<compile_context>
chip_gen: v6e
topology: v6e:2x2x1
jax: 0.10.0
libtpu: 0.0.40
codegen_flags: <defaults>
</compile_context>

<pallas_src>
import functools
import numpy as np

import jax
import jax.numpy as jnp
from jax.experimental import pallas as pl
from jax.experimental.pallas import tpu as pltpu

_F32 = jnp.float32
_BF16 = jnp.bfloat16
_VMEM_LIMIT = 48 * 1024 * 1024   # safe on v5e/v6e (128 MiB) and v7x (64 MiB)


# ----------------------------------------------------------------------------
# Row tiling helpers (no zeros+scatter round trip; pad only if needed)
# ----------------------------------------------------------------------------

def _row_tiling(M, TM=512):
    Mp = ((M + 7) // 8) * 8
    if Mp <= TM:
        return Mp, Mp
    Mp = ((Mp + TM - 1) // TM) * TM
    return Mp, TM


def _pad_rows(x, Mp):
    M = x.shape[0]
    if Mp == M:
        return x
    return jnp.pad(x, ((0, Mp - M), (0, 0)))


# ----------------------------------------------------------------------------
# Pallas kernels
# ----------------------------------------------------------------------------

def _matmul_bias_act_kernel(x_ref, w_ref, b_ref, o_ref, *, act):
    acc = jnp.dot(x_ref[...].astype(_BF16), w_ref[...].astype(_BF16),
                  preferred_element_type=_F32)
    acc = acc + b_ref[...]
    if act == "lrelu":
        acc = jnp.where(acc >= 0, acc, 0.01 * acc)
    elif act == "gelu":
        acc = jax.nn.gelu(acc, approximate=False)     # matches torch nn.GELU
    o_ref[...] = acc


def _matmul_ln_lrelu_kernel(x_ref, w_ref, b_ref, g_ref, be_ref, o_ref, *, eps):
    # (rows @ W + b) -> LayerNorm over output channels -> LeakyReLU
    acc = jnp.dot(x_ref[...].astype(_BF16), w_ref[...].astype(_BF16),
                  preferred_element_type=_F32) + b_ref[...]
    u = jnp.mean(acc, axis=-1, keepdims=True)
    xc = acc - u
    var = jnp.mean(xc * xc, axis=-1, keepdims=True)
    y = xc * jax.lax.rsqrt(var + eps) * g_ref[...] + be_ref[...]
    o_ref[...] = jnp.where(y >= 0, y, 0.01 * y)


def _ln_mlp_res_kernel(h_ref, x_ref, g_ref, b_ref, w1_ref, b1_ref,
                       w2_ref, b2_ref, o_ref, *, eps):
    # Fused ConvNeXt tail: LN -> pwconv1 + GELU -> pwconv2 (gamma folded) -> +x
    h = h_ref[...]
    u = jnp.mean(h, axis=-1, keepdims=True)
    hc = h - u
    var = jnp.mean(hc * hc, axis=-1, keepdims=True)
    h = hc * jax.lax.rsqrt(var + eps) * g_ref[...] + b_ref[...]
    h = jnp.dot(h.astype(_BF16), w1_ref[...].astype(_BF16),
                preferred_element_type=_F32) + b1_ref[...]
    h = jax.nn.gelu(h, approximate=False)
    h = jnp.dot(h.astype(_BF16), w2_ref[...].astype(_BF16),
                preferred_element_type=_F32) + b2_ref[...]
    o_ref[...] = x_ref[...] + h


def _dwconv_kernel(x_ref, w_ref, b_ref, o_ref, *, k, H, W):
    # Depthwise conv with per-sample taps (hyper-generated or shared).
    xp = x_ref[0]                      # (H+2p, W+2p, C)
    w = w_ref[0]                       # (k*k, C)
    C = xp.shape[-1]
    acc = jnp.zeros((H, W, C), _F32)
    for t in range(k * k):
        dy, dx = t // k, t % k
        acc = acc + xp[dy:dy + H, dx:dx + W, :] * w[t]
    o_ref[0] = acc + b_ref[0]
    # TODO(synk): tile over H (with a pad halo) for production resolutions on
    # v7x (64 MiB VMEM) and to improve VPU lane utilization at small C (v5e).


def _hyper_kernel(s_ref, w1_ref, b1_ref, w2_ref, b2_ref, o_ref):
    # Hyper-network MLP: style -> depthwise taps + bias, all blocks of a level.
    h = jnp.dot(s_ref[...], w1_ref[0], preferred_element_type=_F32) + b1_ref[0]
    h = jnp.where(h >= 0, h, 0.01 * h)
    o_ref[0] = jnp.dot(h, w2_ref[0], preferred_element_type=_F32) + b2_ref[0]


def _attn_block_kernel(x_ref, g_ref, b_ref, wq_ref, bq_ref, wk_ref, bk_ref,
                       wv_ref, bv_ref, wo_ref, bo_ref, o_ref, *, scale, eps):
    # Fused: LayerNorm -> q/k/v proj -> softmax(q k^T / sqrt(C)) v -> out proj -> +x
    x = x_ref[0]                       # (HW, C)
    u = jnp.mean(x, axis=-1, keepdims=True)
    xc = x - u
    var = jnp.mean(xc * xc, axis=-1, keepdims=True)
    h = xc * jax.lax.rsqrt(var + eps) * g_ref[...] + b_ref[...]
    hb = h.astype(_BF16)
    q = jnp.dot(hb, wq_ref[...].astype(_BF16), preferred_element_type=_F32) + bq_ref[...]
    k = jnp.dot(hb, wk_ref[...].astype(_BF16), preferred_element_type=_F32) + bk_ref[...]
    v = jnp.dot(hb, wv_ref[...].astype(_BF16), preferred_element_type=_F32) + bv_ref[...]
    # scores = q @ k^T via dot_general contracting last dims (no k transpose copy)
    s = jax.lax.dot_general(q.astype(_BF16), k.astype(_BF16),
                            (((1,), (1,)), ((), ())),
                            preferred_element_type=_F32) * scale
    s = s - jnp.max(s, axis=-1, keepdims=True)
    p = jnp.exp(s)
    p = p / jnp.sum(p, axis=-1, keepdims=True)
    o = jnp.dot(p.astype(_BF16), v.astype(_BF16), preferred_element_type=_F32)
    o = jnp.dot(o.astype(_BF16), wo_ref[...].astype(_BF16),
                preferred_element_type=_F32) + bo_ref[...]
    o_ref[0] = x + o
    # TODO(synk): flash-style tiling over keys for large HW (v7x 64 MiB VMEM).


def _upsample_kernel(x_ref, lh_ref, kw_ref, o_ref):
    # align_corners=True bilinear: (Ho,H)@(H,W*C) then (Ho,W*C)@(W*C,Wo*C)
    y = jnp.dot(lh_ref[...], x_ref[0], preferred_element_type=_F32)
    o_ref[0] = jnp.dot(y, kw_ref[...], preferred_element_type=_F32)


def _deep_head_kernel(xp_ref, w_ref, b_ref, o_ref, *, k, H, W, co):
    # 3x3 conv (pad 1) + LeakyReLU, per-output-channel VPU reduction over the
    # padded NHWC tile; output written directly as NCHW (lane-dense over W).
    xp = xp_ref[0]                     # (H+2, W+2, C)
    w = w_ref[...]                     # (co, k*k, C)
    b = b_ref[...]                     # (1, co)
    C = xp.shape[-1]
    for o in range(co):
        acc = jnp.zeros((H, W, C), _F32)
        for t in range(k * k):
            dy, dx = t // k, t % k
            acc = acc + xp[dy:dy + H, dx:dx + W, :] * w[o, t]
        y = jnp.sum(acc, axis=-1) + b[0, o]
        o_ref[0, o] = jnp.where(y >= 0, y, 0.01 * y)


# ----------------------------------------------------------------------------
# Kernel launchers
# ----------------------------------------------------------------------------

def matmul_bias_act(x, w, b, act="none"):
    M, K = x.shape
    N = w.shape[1]
    Mp, tm = _row_tiling(M)
    xp = _pad_rows(x.astype(_F32), Mp)
    out = pl.pallas_call(
        functools.partial(_matmul_bias_act_kernel, act=act),
        out_shape=jax.ShapeDtypeStruct((Mp, N), _F32),
        grid=(Mp // tm,),
        in_specs=[pl.BlockSpec((tm, K), lambda i: (i, 0)),
                  pl.BlockSpec((K, N), lambda i: (0, 0)),
                  pl.BlockSpec((1, N), lambda i: (0, 0))],
        out_specs=pl.BlockSpec((tm, N), lambda i: (i, 0)),
        compiler_params=pltpu.CompilerParams(
            dimension_semantics=("parallel",), vmem_limit_bytes=_VMEM_LIMIT),
    )(xp, w.astype(_F32), b.reshape(1, N).astype(_F32))
    return out if Mp == M else out[:M]


def matmul_ln_lrelu(x, w, b, g, be, eps=1e-6):
    M, K = x.shape
    N = w.shape[1]
    Mp, tm = _row_tiling(M)
    xp = _pad_rows(x.astype(_F32), Mp)
    out = pl.pallas_call(
        functools.partial(_matmul_ln_lrelu_kernel, eps=eps),
        out_shape=jax.ShapeDtypeStruct((Mp, N), _F32),
        grid=(Mp // tm,),
        in_specs=[pl.BlockSpec((tm, K), lambda i: (i, 0)),
                  pl.BlockSpec((K, N), lambda i: (0, 0)),
                  pl.BlockSpec((1, N), lambda i: (0, 0)),
                  pl.BlockSpec((1, N), lambda i: (0, 0)),
                  pl.BlockSpec((1, N), lambda i: (0, 0))],
        out_specs=pl.BlockSpec((tm, N), lambda i: (i, 0)),
        compiler_params=pltpu.CompilerParams(
            dimension_semantics=("parallel",), vmem_limit_bytes=_VMEM_LIMIT),
    )(xp, w.astype(_F32), b.reshape(1, N).astype(_F32),
      g.reshape(1, N).astype(_F32), be.reshape(1, N).astype(_F32))
    return out if Mp == M else out[:M]


def ln_mlp_residual(h_rows, x_rows, p, eps=1e-6):
    M, C = h_rows.shape
    C4 = p["pw1_w"].shape[1]
    Mp, tm = _row_tiling(M)
    hp = _pad_rows(h_rows.astype(_F32), Mp)
    xp = _pad_rows(x_rows.astype(_F32), Mp)
    # fold layer-scale gamma into pwconv2: gamma*(h@W+b) == h@(W*gamma)+b*gamma
    w2 = p["pw2_w"] * p["gamma"][None, :]
    b2 = p["pw2_b"] * p["gamma"]
    out = pl.pallas_call(
        functools.partial(_ln_mlp_res_kernel, eps=eps),
        out_shape=jax.ShapeDtypeStruct((Mp, C), _F32),
        grid=(Mp // tm,),
        in_specs=[pl.BlockSpec((tm, C), lambda i: (i, 0)),
                  pl.BlockSpec((tm, C), lambda i: (i, 0)),
                  pl.BlockSpec((1, C), lambda i: (0, 0)),
                  pl.BlockSpec((1, C), lambda i: (0, 0)),
                  pl.BlockSpec((C, C4), lambda i: (0, 0)),
                  pl.BlockSpec((1, C4), lambda i: (0, 0)),
                  pl.BlockSpec((C4, C), lambda i: (0, 0)),
                  pl.BlockSpec((1, C), lambda i: (0, 0))],
        out_specs=pl.BlockSpec((tm, C), lambda i: (i, 0)),
        compiler_params=pltpu.CompilerParams(
            dimension_semantics=("parallel",), vmem_limit_bytes=_VMEM_LIMIT),
    )(hp, xp, p["ln_g"].reshape(1, C), p["ln_b"].reshape(1, C),
      p["pw1_w"], p["pw1_b"].reshape(1, C4), w2, b2.reshape(1, C))
    return out if Mp == M else out[:M]


def depthwise_conv(x_nhwc, w, b, k, pad):
    """Depthwise conv with per-sample taps. x:(N,H,W,C) w:(N,k*k,C) b:(N,C)."""
    assert k == 2 * pad + 1, "same-size depthwise conv expected"
    N, H, W, C = x_nhwc.shape
    xpad = jnp.pad(x_nhwc, ((0, 0), (pad, pad), (pad, pad), (0, 0)))
    Hp, Wp = H + 2 * pad, W + 2 * pad
    return pl.pallas_call(
        functools.partial(_dwconv_kernel, k=k, H=H, W=W),
        out_shape=jax.ShapeDtypeStruct((N, H, W, C), _F32),
        grid=(N,),
        in_specs=[pl.BlockSpec((1, Hp, Wp, C), lambda n: (n, 0, 0, 0)),
                  pl.BlockSpec((1, k * k, C), lambda n: (n, 0, 0)),
                  pl.BlockSpec((1, 1, C), lambda n: (n, 0, 0))],
        out_specs=pl.BlockSpec((1, H, W, C), lambda n: (n, 0, 0, 0)),
        compiler_params=pltpu.CompilerParams(
            dimension_semantics=("parallel",), vmem_limit_bytes=_VMEM_LIMIT),
    )(xpad.astype(_F32), w.astype(_F32), b.reshape(N, 1, C).astype(_F32))


def hyper_weights_level(s, blocks, k, C):
    """One pallas_call generating dw taps+bias for every resblock of a level."""
    nr = len(blocks)
    N, sd = s.shape
    hd = blocks[0]["h1_w"].shape[1]
    D = k * k * C + C
    Np = max(8, ((N + 7) // 8) * 8)
    sp = jnp.pad(s.astype(_F32), ((0, Np - N), (0, 0)))
    w1 = jnp.stack([bp["h1_w"] for bp in blocks])                   # (nr, sd, hd)
    b1 = jnp.stack([bp["h1_b"] for bp in blocks]).reshape(nr, 1, hd)
    w2 = jnp.stack([bp["h2_w"] for bp in blocks])                   # (nr, hd, D)
    b2 = jnp.stack([bp["h2_b"] for bp in blocks]).reshape(nr, 1, D)
    out = pl.pallas_call(
        _hyper_kernel,
        out_shape=jax.ShapeDtypeStruct((nr, Np, D), _F32),
        grid=(nr,),
        in_specs=[pl.BlockSpec((Np, sd), lambda j: (0, 0)),
                  pl.BlockSpec((1, sd, hd), lambda j: (j, 0, 0)),
                  pl.BlockSpec((1, 1, hd), lambda j: (j, 0, 0)),
                  pl.BlockSpec((1, hd, D), lambda j: (j, 0, 0)),
                  pl.BlockSpec((1, 1, D), lambda j: (j, 0, 0))],
        out_specs=pl.BlockSpec((1, Np, D), lambda j: (j, 0, 0)),
        compiler_params=pltpu.CompilerParams(dimension_semantics=("parallel",)),
    )(sp, w1, b1, w2, b2)
    out = out[:, :N, :]
    wk = out[:, :, :k * k * C].reshape(nr, N, k * k, C)
    bk = out[:, :, k * k * C:]
    return wk, bk


def attn_block(x, p):
    N, H, W, C = x.shape
    HW = H * W
    scale = 1.0 / float(np.sqrt(C))
    xr = x.reshape(N, HW, C).astype(_F32)
    vec = lambda a: a.reshape(1, C).astype(_F32)
    mat = lambda a: a.astype(_F32)
    out = pl.pallas_call(
        functools.partial(_attn_block_kernel, scale=scale, eps=1e-6),
        out_shape=jax.ShapeDtypeStruct((N, HW, C), _F32),
        grid=(N,),
        in_specs=[pl.BlockSpec((1, HW, C), lambda n: (n, 0, 0)),
                  pl.BlockSpec((1, C), lambda n: (0, 0)),
                  pl.BlockSpec((1, C), lambda n: (0, 0)),
                  pl.BlockSpec((C, C), lambda n: (0, 0)),
                  pl.BlockSpec((1, C), lambda n: (0, 0)),
                  pl.BlockSpec((C, C), lambda n: (0, 0)),
                  pl.BlockSpec((1, C), lambda n: (0, 0)),
                  pl.BlockSpec((C, C), lambda n: (0, 0)),
                  pl.BlockSpec((1, C), lambda n: (0, 0)),
                  pl.BlockSpec((C, C), lambda n: (0, 0)),
                  pl.BlockSpec((1, C), lambda n: (0, 0))],
        out_specs=pl.BlockSpec((1, HW, C), lambda n: (n, 0, 0)),
        compiler_params=pltpu.CompilerParams(
            dimension_semantics=("parallel",), vmem_limit_bytes=_VMEM_LIMIT),
    )(xr, p["n_g"].reshape(1, C), p["n_b"].reshape(1, C),
      mat(p["q_w"]), vec(p["q_b"]), mat(p["k_w"]), vec(p["k_b"]),
      mat(p["v_w"]), vec(p["v_b"]), mat(p["o_w"]), vec(p["o_b"]))
    return out.reshape(N, H, W, C)


def _interp_matrix(n_out, n_in):
    """align_corners=True bilinear interpolation matrix (n_out, n_in)."""
    m = np.zeros((n_out, n_in), np.float32)
    if n_in == 1:
        m[:, 0] = 1.0
        return m
    for o in range(n_out):
        pos = o * (n_in - 1) / (n_out - 1) if n_out > 1 else 0.0
        i0 = min(int(np.floor(pos)), n_in - 2)
        frac = pos - i0
        m[o, i0] += 1.0 - frac
        m[o, i0 + 1] += frac
    return m


def upsample_bilinear_align(x_nhwc, scale):
    N, H, W, C = x_nhwc.shape
    if scale == 1:
        return x_nhwc
    Ho, Wo = H * scale, W * scale
    lh = jnp.asarray(_interp_matrix(Ho, H))                           # (Ho, H)
    lw = _interp_matrix(Wo, W)                                        # (Wo, W)
    # Channel-blocked W interpolation operator (W*C, Wo*C): both MXU dots are
    # lane-dense and no in-kernel transposes/reshapes are needed.
    # TODO(synk): for very large W*C switch to a tiled two-pass contraction.
    kw = jnp.asarray(np.kron(lw, np.eye(C, dtype=np.float32)).T.copy())
    xf = x_nhwc.reshape(N, H, W * C).astype(_F32)
    out = pl.pallas_call(
        _upsample_kernel,
        out_shape=jax.ShapeDtypeStruct((N, Ho, Wo * C), _F32),
        grid=(N,),
        in_specs=[pl.BlockSpec((1, H, W * C), lambda n: (n, 0, 0)),
                  pl.BlockSpec((Ho, H), lambda n: (0, 0)),
                  pl.BlockSpec((W * C, Wo * C), lambda n: (0, 0))],
        out_specs=pl.BlockSpec((1, Ho, Wo * C), lambda n: (n, 0, 0)),
        compiler_params=pltpu.CompilerParams(
            dimension_semantics=("parallel",), vmem_limit_bytes=_VMEM_LIMIT),
    )(xf, lh, kw)
    return out.reshape(N, Ho, Wo, C)


def conv3x3_head_nchw(x_nhwc, w, b):
    """3x3 conv (pad 1) + LeakyReLU, output written directly as NCHW.

    w: (co, 9, C) taps (dy,dx)-major; a PyTorch Conv2d weight (co, C, 3, 3)
    maps via transpose(0, 2, 3, 1).reshape(co, 9, C)."""
    N, H, W, C = x_nhwc.shape
    co = w.shape[0]
    xpad = jnp.pad(x_nhwc, ((0, 0), (1, 1), (1, 1), (0, 0)))
    return pl.pallas_call(
        functools.partial(_deep_head_kernel, k=3, H=H, W=W, co=co),
        out_shape=jax.ShapeDtypeStruct((N, co, H, W), _F32),
        grid=(N,),
        in_specs=[pl.BlockSpec((1, H + 2, W + 2, C), lambda n: (n, 0, 0, 0)),
                  pl.BlockSpec((co, 9, C), lambda n: (0, 0, 0)),
                  pl.BlockSpec((1, co), lambda n: (0, 0))],
        out_specs=pl.BlockSpec((1, co, H, W), lambda n: (n, 0, 0, 0)),
        compiler_params=pltpu.CompilerParams(
            dimension_semantics=("parallel",), vmem_limit_bytes=_VMEM_LIMIT),
    )(xpad.astype(_F32), w.astype(_F32), b.reshape(1, co).astype(_F32))


# ----------------------------------------------------------------------------
# Block / layer wrappers
# ----------------------------------------------------------------------------

def conv1x1(x_nhwc, w, b, act="none"):
    N, H, W, C = x_nhwc.shape
    out = matmul_bias_act(x_nhwc.reshape(N * H * W, C), w, b, act)
    return out.reshape(N, H, W, -1)


def patchify_conv(x_nhwc, w, b, de):
    """Conv2d(kernel=de, stride=de, padding=0) — non-overlapping patches."""
    N, H, W, C = x_nhwc.shape
    Ho, Wo = H // de, W // de
    if de == 1:
        patches = x_nhwc.reshape(N * H * W, C)
    else:
        xr = x_nhwc.reshape(N, Ho, de, Wo, de, C).transpose(0, 1, 3, 2, 4, 5)
        patches = xr.reshape(N * Ho * Wo, de * de * C)
    out = matmul_bias_act(patches, w, b)
    return out.reshape(N, Ho, Wo, -1)


def conv3x3_im2col(x_nhwc):
    """(N*H*W, 9*C) patches, (dy,dx)-major, C inner.
    TODO(synk): fuse the shifted-window matmuls in-kernel (as the deep heads
    do) to avoid materializing the 9x patch tensor for the up_out c1 conv."""
    N, H, W, C = x_nhwc.shape
    xpad = jnp.pad(x_nhwc, ((0, 0), (1, 1), (1, 1), (0, 0)))
    cols = [xpad[:, dy:dy + H, dx:dx + W, :] for dy in range(3) for dx in range(3)]
    return jnp.concatenate(cols, axis=-1).reshape(N * H * W, 9 * C)


def convnext_block(x, p, k, pad, hyper_wb=None):
    """ConvNeXt block: dwconv -> LN -> pw1 -> GELU -> pw2 -> gamma -> +x."""
    N, H, W, C = x.shape
    if hyper_wb is None:
        wk = jnp.broadcast_to(p["dw_w"][None], (N, k * k, C))
        bk = jnp.broadcast_to(p["dw_b"][None], (N, C))
    else:
        wk, bk = hyper_wb
    h = depthwise_conv(x, wk, bk, k, pad)
    out = ln_mlp_residual(h.reshape(N * H * W, C), x.reshape(N * H * W, C), p)
    return out.reshape(N, H, W, C)


def hyper_attn_resblock(x, s, p, n_layer, k, pad):
    C = x.shape[-1]
    wk, bk = hyper_weights_level(s, p["blocks"], k, C)   # one call, all blocks
    for j in range(n_layer):
        x = convnext_block(x, p["blocks"][j], k, pad, hyper_wb=(wk[j], bk[j]))
    x = attn_block(x, p["attn"])
    return x


# ----------------------------------------------------------------------------
# HyperImageDecoder forward
# ----------------------------------------------------------------------------

def hyper_image_decoder_forward(params, cfg, z_nchw, s):
    z = jnp.transpose(z_nchw, (0, 2, 3, 1)).astype(_F32)   # NCHW -> NHWC
    outputs = []
    x_pre = None
    for i, ce in enumerate(cfg["conv_channels"]):
        lp = params["levels"][i]
        de = cfg["conv_down"][i]
        se = cfg["conv_stride"][i]
        kr = cfg["resblock_kernel"][i]
        pr = cfg["resblock_padding"][i]
        nr = cfg["resblock_n"][i]
        x = patchify_conv(z, lp["down_w"], lp["down_b"], de)        # down
        if i != 0:
            x = jnp.concatenate([x, x_pre], axis=-1)                # cat([x, x_pre])
            x = conv1x1(x, lp["mid_w"], lp["mid_b"])                # midconv
        x = hyper_attn_resblock(x, s, lp["res"], nr, kr, pr)        # midres
        x_pre = upsample_bilinear_align(x, se)                      # up
        # deep-supervision head: 3x3 conv + LeakyReLU, written directly as NCHW
        outputs.append(conv3x3_head_nchw(x_pre, lp["deep_w"], lp["deep_b"]))

    # up_out: ResBlock -> upsample x2 -> conv3x3 -> LN(channels_first)+lrelu
    #         -> conv3x3 -> lrelu
    up = params["up_out"]
    x = convnext_block(x_pre, up["res"], 3, 1)
    x = upsample_bilinear_align(x, 2)
    N, H, W, _ = x.shape
    ch = up["c1_b"].shape[0]
    h = matmul_ln_lrelu(conv3x3_im2col(x), up["c1_w"], up["c1_b"],
                        up["ln_g"], up["ln_b"])
    h = h.reshape(N, H, W, ch)
    outputs.append(conv3x3_head_nchw(h, up["c2_w"], up["c2_b"]))

    outputs = outputs[::-1]
    if not cfg["deep_supervision"]:
        return outputs[0]
    return outputs


# ----------------------------------------------------------------------------
# Deterministic parameter init (synthetic weights; no checkpoint load)
# ----------------------------------------------------------------------------

def _init(key, shape, scale=0.1):
    return scale * jax.random.normal(key, shape, dtype=_F32)


def init_params(key, cfg):
    keys = iter(jax.random.split(key, 1024))
    nk = lambda: next(keys)
    lsiv = cfg["layer_scale_init_value"]
    sd, hd = cfg["style_dim"], cfg["hyper_conv_dim"]
    ld, co = cfg["latent_space_dim"], cfg["out_channels"]
    levels, c_pre = [], None
    for i, ce in enumerate(cfg["conv_channels"]):
        de = cfg["conv_down"][i]
        kr = cfg["resblock_kernel"][i]
        nr = cfg["resblock_n"][i]
        lp = {"down_w": _init(nk(), (de * de * ld, ce)),
              "down_b": _init(nk(), (ce,), 0.01)}
        if i != 0:
            lp["mid_w"] = _init(nk(), (ce + c_pre, ce))
            lp["mid_b"] = _init(nk(), (ce,), 0.01)
        blocks = []
        for _ in range(nr):
            blocks.append({
                "h1_w": _init(nk(), (sd, hd)),
                "h1_b": _init(nk(), (hd,), 0.01),
                "h2_w": _init(nk(), (hd, kr * kr * ce + ce), 0.05),
                "h2_b": _init(nk(), (kr * kr * ce + ce,), 0.01),
                "ln_g": jnp.ones((ce,), _F32),
                "ln_b": jnp.zeros((ce,), _F32),
                "pw1_w": _init(nk(), (ce, 4 * ce)),
                "pw1_b": _init(nk(), (4 * ce,), 0.01),
                "pw2_w": _init(nk(), (4 * ce, ce)),
                "pw2_b": _init(nk(), (ce,), 0.01),
                "gamma": jnp.full((ce,), lsiv, _F32),
            })
        attn = {"n_g": jnp.ones((ce,), _F32), "n_b": jnp.zeros((ce,), _F32),
                "q_w": _init(nk(), (ce, ce)), "q_b": _init(nk(), (ce,), 0.01),
                "k_w": _init(nk(), (ce, ce)), "k_b": _init(nk(), (ce,), 0.01),
                "v_w": _init(nk(), (ce, ce)), "v_b": _init(nk(), (ce,), 0.01),
                "o_w": _init(nk(), (ce, ce)), "o_b": _init(nk(), (ce,), 0.01)}
        lp["res"] = {"blocks": blocks, "attn": attn}
        lp["deep_w"] = _init(nk(), (co, 9, ce))          # (co, taps, C)
        lp["deep_b"] = _init(nk(), (co,), 0.01)
        levels.append(lp)
        c_pre = ce
    ch = c_pre // 2
    up = {"res": {"dw_w": _init(nk(), (9, c_pre)),
                  "dw_b": _init(nk(), (c_pre,), 0.01),
                  "ln_g": jnp.ones((c_pre,), _F32),
                  "ln_b": jnp.zeros((c_pre,), _F32),
                  "pw1_w": _init(nk(), (c_pre, 4 * c_pre)),
                  "pw1_b": _init(nk(), (4 * c_pre,), 0.01),
                  "pw2_w": _init(nk(), (4 * c_pre, c_pre)),
                  "pw2_b": _init(nk(), (c_pre,), 0.01),
                  "gamma": jnp.full((c_pre,), lsiv, _F32)},
          "c1_w": _init(nk(), (9 * c_pre, ch)), "c1_b": _init(nk(), (ch,), 0.01),
          "ln_g": jnp.ones((ch,), _F32), "ln_b": jnp.zeros((ch,), _F32),
          "c2_w": _init(nk(), (co, 9, ch)), "c2_b": _init(nk(), (co,), 0.01)}
    return {"levels": levels, "up_out": up}


# ----------------------------------------------------------------------------

if __name__ == "__main__":
    cfg = dict(
        out_channels=1,
        conv_channels=[16, 8],
        conv_kernel=[3, 3],            # present in args; unused by forward (as in PyTorch)
        conv_stride=[2, 2],            # upsample scale per level
        conv_down=[2, 1],              # patchify kernel/stride per level
        resblock_n=[1, 1],
        resblock_kernel=[3, 3],
        resblock_padding=[1, 1],
        layer_scale_init_value=1e-6,
        hyper_conv_dim=16,
        latent_space_dim=8,
        style_dim=16,
        deep_supervision=True,
    )
    key = jax.random.PRNGKey(0)
    kp, kz, ks = jax.random.split(key, 3)
    params = init_params(kp, cfg)
    z = jax.random.normal(kz, (2, cfg["latent_space_dim"], 8, 8), _F32)  # NCHW
    s = jax.random.normal(ks, (2, cfg["style_dim"]), _F32)

    outs = hyper_image_decoder_forward(params, cfg, z, s)
    outs = [jax.block_until_ready(o) for o in outs]
    expected = [(2, 1, 32, 32), (2, 1, 16, 16), (2, 1, 8, 8)]
    assert [tuple(o.shape) for o in outs] == expected, [o.shape for o in outs]
    assert all(bool(jnp.all(jnp.isfinite(o))) for o in outs)
    print("KERNEL_OK")
</pallas_src>

<mosaic_0001>
module attributes {stable_mosaic.version = 11 : i64} {
  func.func @_matmul_bias_act_kernel(%arg0: i32, %arg1: memref<32x32xf32, #tpu.memory_space<vmem>>, %arg2: memref<32x16xf32, #tpu.memory_space<vmem>>, %arg3: memref<1x16xf32, #tpu.memory_space<vmem>>, %arg4: memref<32x16xf32, #tpu.memory_space<vmem>>) attributes {dimension_semantics = [#tpu.dimension_semantics<parallel>], iteration_bounds = array<i64: 1>, scalar_prefetch = 0 : i64, scratch_operands = 0 : i64, tpu.core_type = #tpu.core_type<tc>, window_params = [{transform_indices = @transform_0, window_bounds = array<i64: 32, 32>}, {pipeline_mode = #tpu.pipeline_mode<synchronous>, transform_indices = @transform_1, window_bounds = array<i64: 32, 16>}, {pipeline_mode = #tpu.pipeline_mode<synchronous>, transform_indices = @transform_2, window_bounds = array<i64: 1, 16>}, {transform_indices = @transform_3, window_bounds = array<i64: 32, 16>}]} {
    %c0 = arith.constant 0 : index
    %c0_0 = arith.constant 0 : index
    %0 = vector.load %arg1[%c0, %c0_0] : memref<32x32xf32, #tpu.memory_space<vmem>>, vector<32x32xf32>
    %1 = arith.truncf %0 : vector<32x32xf32> to vector<32x32xbf16>
    %c0_1 = arith.constant 0 : index
    %c0_2 = arith.constant 0 : index
    %2 = vector.load %arg2[%c0_1, %c0_2] : memref<32x16xf32, #tpu.memory_space<vmem>>, vector<32x16xf32>
    %3 = arith.truncf %2 : vector<32x16xf32> to vector<32x16xbf16>
    %cst = arith.constant dense<0.000000e+00> : vector<32x16xf32>
    %4 = tpu.matmul %1, %3, %cst {dimension_numbers = #tpu.dot_dimension_numbers<[1], [0], [0], [1], [0, 0, 1, 1], [], []>} : vector<32x32xbf16>, vector<32x16xbf16>, vector<32x16xf32> -> vector<32x16xf32>
    %c0_3 = arith.constant 0 : index
    %c0_4 = arith.constant 0 : index
    %5 = vector.load %arg3[%c0_3, %c0_4] : memref<1x16xf32, #tpu.memory_space<vmem>>, vector<1x16xf32>
    %6 = vector.broadcast %5 : vector<1x16xf32> to vector<32x16xf32>
    %7 = arith.addf %4, %6 : vector<32x16xf32>
    %c0_5 = arith.constant 0 : index
    %c0_6 = arith.constant 0 : index
    %8 = vector.load %arg4[%c0_5, %c0_6] : memref<32x16xf32, #tpu.memory_space<vmem>>, vector<32x16xf32>
    tpu.vector_store %arg4[%c0_5, %c0_6], %7 {strides = array<i32>} : memref<32x16xf32, #tpu.memory_space<vmem>>, vector<32x16xf32>,
    return
  }
  func.func @transform_0(%arg0: i32) -> (i32, i32) {
    %c0_i32 = arith.constant 0 : i32
    %c0_i32_0 = arith.constant 0 : i32
    return %arg0, %c0_i32 : i32, i32
  }
  func.func @transform_1(%arg0: i32) -> (i32, i32) {
    %c0_i32 = arith.constant 0 : i32
    %c0_i32_0 = arith.constant 0 : i32
    %c0_i32_1 = arith.constant 0 : i32
    return %c0_i32, %c0_i32_0 : i32, i32
  }
  func.func @transform_2(%arg0: i32) -> (i32, i32) {
    %c0_i32 = arith.constant 0 : i32
    %c0_i32_0 = arith.constant 0 : i32
    %c0_i32_1 = arith.constant 0 : i32
    return %c0_i32, %c0_i32_0 : i32, i32
  }
  func.func @transform_3(%arg0: i32) -> (i32, i32) {
    %c0_i32 = arith.constant 0 : i32
    %c0_i32_0 = arith.constant 0 : i32
    return %arg0, %c0_i32 : i32, i32
  }
}

</mosaic_0001>

<llo_original>
// kernel: tpu_custom_call.1
$region0: #{tpu_custom_call.1}
  #allocation0 [shape = 'u32[]', space=smem, size = 0x4, offset = 0x4, fixed_abs, tag = 'smem constant byte address 0x4 - core index']
  #allocation1 [shape = 'u32[144,128]{1,0:T(1,128)}', space=vmem, size = 0x12000, scoped, tag = 'internal scratch']
  %s0 = inlined_call_operand.vmem [shape: f32[32,32], index: 0, kind: input, shape index: {}]
  %s1 = inlined_call_operand.vmem [shape: f32[32,16], index: 1, kind: input, shape index: {}]
  %s2 = inlined_call_operand.vmem [shape: f32[1,16], index: 2, kind: input, shape index: {}]
  %s3 = inlined_call_operand.vmem [shape: f32[32,16], index: 3, kind: output, shape index: {}]
  %s4 = sld [smem:[#allocation0]]
  $region22: #{tpu_custom_call.1} parent=0
    _
  %s6 = ssub.s32 1, %s4
  %s7 = scalar_select 0, %s6, %s4
  // Predicated region
  $region2: #{tpu_custom_call.1} parent=0 // pred_check
    _
  $region3: #{tpu_custom_call.1} parent=0 // pred_check_branch
    %9 = sbr.rel (0) target = $region5
  $region4: #{tpu_custom_call.1} parent=0 // pred_region
    _
  $region5: #{tpu_custom_call.1} parent=0 // pred_fallthru
    _
  // Predicated region
  $region6: #{tpu_custom_call.1} parent=0 // pred_check
    _
  $region7: #{tpu_custom_call.1} parent=0 // pred_check_branch
    %11 = sbr.rel (0) target = $region9
  $region8: #{tpu_custom_call.1} parent=0 // pred_region
    _
  $region9: #{tpu_custom_call.1} parent=0 // pred_fallthru
    _
  // Predicated region
  $region10: #{tpu_custom_call.1} parent=0 // pred_check
    _
  $region11: #{tpu_custom_call.1} parent=0 // pred_check_branch
    %13 = sbr.rel (0) target = $region13
  $region12: #{tpu_custom_call.1} parent=0 // pred_region
    _
  $region13: #{tpu_custom_call.1} parent=0 // pred_fallthru
    _
  %v15 = vld [vmem:[%s0] sm:$0xff]
  %v16 = vld [vmem:[%s0 + $0x8] sm:$0xff]
  %v17 = vld [vmem:[%s0 + $0x10] sm:$0xff]
  %v18 = vld [vmem:[%s0 + $0x18] sm:$0xff]
  %v19 = vpack.c.bf16 %v16, %v15
  %v20 = vpack.c.bf16 %v18, %v17
  %v21 = vld [vmem:[%s1] sm:$0xff]
  %v22 = vld [vmem:[%s1 + $0x8] sm:$0xff]
  %v23 = vld [vmem:[%s1 + $0x10] sm:$0xff]
  %v24 = vld [vmem:[%s1 + $0x18] sm:$0xff]
  %v25 = vpack.c.bf16 %v22, %v21
  %v26 = vpack.c.bf16 %v24, %v23
  %v27 = vld [vmem:[%s2] sm:$0x1]
  %v29 = vlaneseq
  %v30 = vshrl.u32 %v29, 7
  %v31 = vsub.s32 0, %v30
  %v32 = vrot.slane %v27, %v31
  %vm34 = vcmask 261120
  %v36 = vsel %vm34, %v19, 0
  %v39 = vsel %vm34, %v20, 0
  %41 = vmatprep.subr.bf16.mxu0 0
  %42 = vmatpush1.bf16.msra.mxu0 0
  %43 = vmatprep.subr.bf16.mxu0 0
  %44 = vmatpush1.bf16.msra.mxu0 0
  %45 = vmatprep.subr.bf16.mxu0 0
  %46 = vmatpush1.bf16.msra.mxu0 0
  %47 = vmatprep.subr.bf16.mxu0 0
  %48 = vmatpush1.bf16.msra.mxu0 0
  %49 = vmatprep.subr.bf16.mxu0 0
  %50 = vmatpush1.bf16.msra.mxu0 0
  %51 = vmatprep.subr.bf16.mxu0 0
  %52 = vmatpush1.bf16.msra.mxu0 0
  %53 = vmatprep.subr.bf16.mxu0 0
  %54 = vmatpush1.bf16.msra.mxu0 %v26
  %55 = vmatprep.subr.bf16.mxu0 0
  %56 = vmatpush1.bf16.msra.mxu0 %v25
  %57 = vmatprep.subr.bf16.mxu0 0
  %58 = vmatpush2.bf16.msra.mxu0 0
  %59 = vmatprep.subr.bf16.mxu0 0
  %60 = vmatpush2.bf16.msra.mxu0 0
  %61 = vmatprep.subr.bf16.mxu0 0
  %62 = vmatpush2.bf16.msra.mxu0 0
  %63 = vmatprep.subr.bf16.mxu0 0
  %64 = vmatpush2.bf16.msra.mxu0 0
  %65 = vmatprep.subr.bf16.mxu0 0
  %66 = vmatpush2.bf16.msra.mxu0 0
  %67 = vmatprep.subr.bf16.mxu0 0
  %68 = vmatpush2.bf16.msra.mxu0 0
  %69 = vmatprep.subr.bf16.mxu0 0
  %70 = vmatpush2.bf16.msra.mxu0 0
  %71 = vmatprep.subr.bf16.mxu0 0
  %72 = vmatpush2.bf16.msra.mxu0 0
  %73 = vmatprep.mubr.bf16.mxu0 0
  %74 = vmatmul.mubr.bf16.gmra.mxu0 %v36
  %v75 = vpop.f32.mrf.mxu0
  %v76 = vadd.f32 %v32, %v75
  %v77 = vpop.f32.mrf.mxu0
  %v78 = vpop.f32.mrf.mxu0
  %v79 = vadd.f32 %v32, %v78
  %v80 = vpop.f32.mrf.mxu0
  %81 = vmatprep.mubr.bf16.mxu0 0
  %82 = vmatmul.mubr.bf16.gmra.mxu0 %v39
  %v83 = vpop.f32.mrf.mxu0
  %v84 = vadd.f32 %v32, %v83
  %v85 = vpop.f32.mrf.mxu0
  %v86 = vpop.f32.mrf.mxu0
  %v87 = vadd.f32 %v32, %v86
  %v88 = vpop.f32.mrf.mxu0
  %89 = vdwg.mxu0
  %vm90 = vcmask 130048
  %91 = vst.msk [vmem:[%s3] sm:$0xff] %vm90, %v76
  %92 = vst.msk [vmem:[%s3 + $0x8] sm:$0xff] %vm90, %v79
  %93 = vst.msk [vmem:[%s3 + $0x10] sm:$0xff] %vm90, %v84
  %94 = vst.msk [vmem:[%s3 + $0x18] sm:$0xff] %vm90, %v87
  // Predicated region
  $region14: #{tpu_custom_call.1} parent=0 // pred_check
    _
  $region15: #{tpu_custom_call.1} parent=0 // pred_check_branch
    %96 = sbr.rel (0) target = $region17
  $region16: #{tpu_custom_call.1} parent=0 // pred_region
    _
  $region17: #{tpu_custom_call.1} parent=0 // pred_fallthru
    _
  // Predicated region
  $region18: #{tpu_custom_call.1} parent=0 // pred_check
    _
  $region19: #{tpu_custom_call.1} parent=0 // pred_check_branch
    %98 = sbr.rel (0) target = $region21
  $region20: #{tpu_custom_call.1} parent=0 // pred_region
    _
  $region21: #{tpu_custom_call.1} parent=0 // pred_fallthru
    _

</llo_original>
